<compile_context>
chip_gen: v6e
topology: v6e:2x2x1
jax: 0.10.0
libtpu: 0.0.40
codegen_flags: <defaults>
</compile_context>

<pallas_src>
import jax
import jax.numpy as jnp
from jax.experimental import pallas as pl
from jax.experimental.pallas import tpu as pltpu


def _round_up(n, m):
    return ((n + m - 1) // m) * m


def _chip_tuning():
    """Pick (tile_b_max, vmem_limit_bytes) from the chip's VMEM capacity."""
    vmem_bytes = 64 << 20  # conservative fallback (v7x-sized)
    try:
        info = pltpu.get_tpu_info()
        vmem_bytes = getattr(info, "vmem_capacity_bytes", vmem_bytes)
    except Exception:
        pass
    if vmem_bytes >= (100 << 20):   # v5e / v6e: 128 MiB VMEM per core
        return 8192, 96 << 20
    return 4096, 44 << 20           # v7x: 64 MiB VMEM per core


def valuenet_kernel(x_ref, w1_ref, b1_ref, w2_ref, b2_ref, w3_ref, b3_ref, o_ref):
    """relu(relu(x@W1+b1)@W2+b2) . w3 + b3 for one (TB, K) batch tile."""
    # x streamed from HBM in its native f32/K=150; cast to bf16 in-register so
    # the dot feeds the MXU (Mosaic pads the 150-wide contraction internally).
    x = x_ref[...].astype(w1_ref.dtype)
    # Layer 1: MXU matmul with f32 accumulation, bias + ReLU in f32.
    h1 = jnp.dot(x, w1_ref[...], preferred_element_type=jnp.float32) + b1_ref[...]
    h1 = jnp.maximum(h1, 0.0).astype(w2_ref.dtype)
    # Layer 2.
    h2 = jnp.dot(h1, w2_ref[...], preferred_element_type=jnp.float32) + b2_ref[...]
    h2 = jnp.maximum(h2, 0.0)
    # Layer 3 (out_features == 1): VPU multiply + XLU lane-reduce, skip the MXU.
    w3 = w3_ref[...].astype(jnp.float32)                     # (1, H_pad) broadcast row
    y = jnp.sum(h2 * w3, axis=-1, keepdims=True) + b3_ref[0, 0]
    o_ref[...] = y.astype(o_ref.dtype)


def prepare_params(params, compute_dtype=jnp.bfloat16):
    """Pad/cast the (tiny) weights once; reuse the result across forward calls.

    Zero padding of the hidden dim (64 -> 128) keeps the math exact: padded
    lanes carry 0 through bias, ReLU and the final dot.
    """
    K, H = params["w1"].shape
    H_pad = _round_up(H, 128)

    def pad2(a, rows, cols, dtype):
        a = a.astype(dtype)
        return jnp.pad(a, ((0, rows - a.shape[0]), (0, cols - a.shape[1])))

    return {
        "w1": pad2(params["w1"], K, H_pad, compute_dtype),       # (K, H_pad), K = full 150
        "b1": pad2(params["b1"], 1, H_pad, jnp.float32),
        "w2": pad2(params["w2"], H_pad, H_pad, compute_dtype),
        "b2": pad2(params["b2"], 1, H_pad, jnp.float32),
        "w3": pad2(params["w3"].T, 1, H_pad, compute_dtype),     # (1, H_pad) row
        "b3": params["b3"].astype(jnp.float32).reshape(1, 1),    # scalar -> SMEM
    }


def value_net_forward(x, prepared, *, tile_b_max=None, vmem_limit_bytes=None):
    """x: (B, state_dim) float. prepared: output of prepare_params. Returns (B, 1) f32."""
    B, K = x.shape
    H_pad = prepared["w1"].shape[1]
    assert prepared["w1"].shape[0] == K, "prepared params do not match state_dim"

    if tile_b_max is None or vmem_limit_bytes is None:
        tb_auto, vmem_auto = _chip_tuning()
        tile_b_max = tile_b_max or tb_auto
        vmem_limit_bytes = vmem_limit_bytes or vmem_auto

    # Batch tile: multiple of 16 (bf16 sublane packing for the MXU feed), large
    # enough to amortize the ~0.35us per-grid-step overhead, capped for VMEM.
    TB = min(tile_b_max, _round_up(B, 16))
    # Mid-size batches: use >=2 grid steps so both v7x TensorCores get work
    # (negligible cost on single-TC chips).
    if B >= 1024 and pl.cdiv(B, TB) == 1:
        TB = _round_up(pl.cdiv(B, 2), 16)
    num_tiles = pl.cdiv(B, TB)

    cost = pl.CostEstimate(
        flops=2 * B * (K * H_pad + H_pad * H_pad + H_pad),
        transcendentals=0,
        bytes_accessed=x.size * x.dtype.itemsize
        + sum(int(v.size) * v.dtype.itemsize for v in prepared.values())
        + B * 4,
    )

    out = pl.pallas_call(
        valuenet_kernel,
        out_shape=jax.ShapeDtypeStruct((B, 1), jnp.float32),
        grid=(num_tiles,),
        in_specs=[
            pl.BlockSpec((TB, K), lambda i: (i, 0)),            # x: streamed, K = full dim
            pl.BlockSpec((K, H_pad), lambda i: (0, 0)),         # W1: VMEM-resident
            pl.BlockSpec((1, H_pad), lambda i: (0, 0)),         # b1
            pl.BlockSpec((H_pad, H_pad), lambda i: (0, 0)),     # W2
            pl.BlockSpec((1, H_pad), lambda i: (0, 0)),         # b2
            pl.BlockSpec((1, H_pad), lambda i: (0, 0)),         # w3 row
            pl.BlockSpec(memory_space=pltpu.MemorySpace.SMEM),  # b3 scalar
        ],
        out_specs=pl.BlockSpec((TB, 1), lambda i: (i, 0)),
        compiler_params=pltpu.CompilerParams(
            dimension_semantics=("parallel",),
            vmem_limit_bytes=vmem_limit_bytes,
        ),
        cost_estimate=cost,
    )(x, prepared["w1"], prepared["b1"], prepared["w2"], prepared["b2"],
      prepared["w3"], prepared["b3"])

    return out


def init_params(key, state_dim, hidden_dim):
    """Param init mimicking nn.Linear default (uniform +/- 1/sqrt(fan_in)).

    Weights stored as (in_features, out_features) so y = x @ W + b; biases (1, out).
    """
    ks = jax.random.split(key, 6)

    def lin(kw, kb, fan_in, fan_out):
        bound = 1.0 / jnp.sqrt(fan_in)
        w = jax.random.uniform(kw, (fan_in, fan_out), jnp.float32, -bound, bound)
        b = jax.random.uniform(kb, (1, fan_out), jnp.float32, -bound, bound)
        return w, b

    w1, b1 = lin(ks[0], ks[1], state_dim, hidden_dim)
    w2, b2 = lin(ks[2], ks[3], hidden_dim, hidden_dim)
    w3, b3 = lin(ks[4], ks[5], hidden_dim, 1)
    return {"w1": w1, "b1": b1, "w2": w2, "b2": b2, "w3": w3, "b3": b3}


def value_net_ref(x, params):
    """Pure-JAX f32 reference matching the PyTorch module."""
    h1 = jnp.maximum(x @ params["w1"] + params["b1"], 0.0)
    h2 = jnp.maximum(h1 @ params["w2"] + params["b2"], 0.0)
    return h2 @ params["w3"] + params["b3"]


if __name__ == "__main__":
    # Small synthetic shapes consistent with the module:
    # Combat3 observation vector -> state_dim (synthetic value), hidden_dim=64.
    batch = 8
    state_dim = 150
    hidden_dim = 64

    key = jax.random.PRNGKey(0)
    k_x, k_p = jax.random.split(key)
    x = jax.random.normal(k_x, (batch, state_dim), jnp.float32)
    params = init_params(k_p, state_dim, hidden_dim)
    prepared = prepare_params(params)   # pad/cast weights once, reuse every call

    out = value_net_forward(x, prepared)
    out = jax.block_until_ready(out)

    ref = value_net_ref(x, params)
    assert out.shape == (batch, 1), out.shape
    # bf16 MXU inputs with f32 accumulation -> loosened tolerance vs f32 reference.
    assert jnp.allclose(out, ref, atol=3e-2, rtol=3e-2), "mismatch vs reference"
    print("KERNEL_OK")
</pallas_src>

<mosaic_0001>
module attributes {stable_mosaic.version = 11 : i64} {
  func.func @valuenet_kernel(%arg0: i32, %arg1: memref<16x150xf32, #tpu.memory_space<vmem>>, %arg2: memref<150x128xbf16, #tpu.memory_space<vmem>>, %arg3: memref<1x128xf32, #tpu.memory_space<vmem>>, %arg4: memref<128x128xbf16, #tpu.memory_space<vmem>>, %arg5: memref<1x128xf32, #tpu.memory_space<vmem>>, %arg6: memref<1x128xbf16, #tpu.memory_space<vmem>>, %arg7: memref<1x1xf32, #tpu.memory_space<smem>>, %arg8: memref<16x1xf32, #tpu.memory_space<vmem>>) attributes {dimension_semantics = [#tpu.dimension_semantics<parallel>], iteration_bounds = array<i64: 1>, scalar_prefetch = 0 : i64, scratch_operands = 0 : i64, tpu.core_type = #tpu.core_type<tc>, window_params = [{transform_indices = @transform_0, window_bounds = array<i64: 16, 150>}, {pipeline_mode = #tpu.pipeline_mode<synchronous>, transform_indices = @transform_1, window_bounds = array<i64: 150, 128>}, {pipeline_mode = #tpu.pipeline_mode<synchronous>, transform_indices = @transform_2, window_bounds = array<i64: 1, 128>}, {pipeline_mode = #tpu.pipeline_mode<synchronous>, transform_indices = @transform_3, window_bounds = array<i64: 128, 128>}, {pipeline_mode = #tpu.pipeline_mode<synchronous>, transform_indices = @transform_4, window_bounds = array<i64: 1, 128>}, {pipeline_mode = #tpu.pipeline_mode<synchronous>, transform_indices = @transform_5, window_bounds = array<i64: 1, 128>}, {transform_indices = @transform_6, window_bounds = array<i64: 1, 1>}, {transform_indices = @transform_7, window_bounds = array<i64: 16, 1>}]} {
    %c0 = arith.constant 0 : index
    %c0_0 = arith.constant 0 : index
    %0 = vector.load %arg1[%c0, %c0_0] : memref<16x150xf32, #tpu.memory_space<vmem>>, vector<16x150xf32>
    %1 = arith.truncf %0 : vector<16x150xf32> to vector<16x150xbf16>
    %c0_1 = arith.constant 0 : index
    %c0_2 = arith.constant 0 : index
    %2 = vector.load %arg2[%c0_1, %c0_2] : memref<150x128xbf16, #tpu.memory_space<vmem>>, vector<150x128xbf16>
    %cst = arith.constant dense<0.000000e+00> : vector<16x128xf32>
    %3 = tpu.matmul %1, %2, %cst {dimension_numbers = #tpu.dot_dimension_numbers<[1], [0], [0], [1], [0, 0, 1, 1], [], []>} : vector<16x150xbf16>, vector<150x128xbf16>, vector<16x128xf32> -> vector<16x128xf32>
    %c0_3 = arith.constant 0 : index
    %c0_4 = arith.constant 0 : index
    %4 = vector.load %arg3[%c0_3, %c0_4] : memref<1x128xf32, #tpu.memory_space<vmem>>, vector<1x128xf32>
    %5 = vector.broadcast %4 : vector<1x128xf32> to vector<16x128xf32>
    %6 = arith.addf %3, %5 : vector<16x128xf32>
    %cst_5 = arith.constant 0.000000e+00 : f32
    %7 = vector.broadcast %cst_5 : f32 to vector<16x128xf32>
    %8 = arith.maximumf %6, %7 : vector<16x128xf32>
    %9 = arith.truncf %8 : vector<16x128xf32> to vector<16x128xbf16>
    %c0_6 = arith.constant 0 : index
    %c0_7 = arith.constant 0 : index
    %10 = vector.load %arg4[%c0_6, %c0_7] : memref<128x128xbf16, #tpu.memory_space<vmem>>, vector<128x128xbf16>
    %cst_8 = arith.constant dense<0.000000e+00> : vector<16x128xf32>
    %11 = tpu.matmul %9, %10, %cst_8 {dimension_numbers = #tpu.dot_dimension_numbers<[1], [0], [0], [1], [0, 0, 1, 1], [], []>} : vector<16x128xbf16>, vector<128x128xbf16>, vector<16x128xf32> -> vector<16x128xf32>
    %c0_9 = arith.constant 0 : index
    %c0_10 = arith.constant 0 : index
    %12 = vector.load %arg5[%c0_9, %c0_10] : memref<1x128xf32, #tpu.memory_space<vmem>>, vector<1x128xf32>
    %13 = vector.broadcast %12 : vector<1x128xf32> to vector<16x128xf32>
    %14 = arith.addf %11, %13 : vector<16x128xf32>
    %cst_11 = arith.constant 0.000000e+00 : f32
    %15 = vector.broadcast %cst_11 : f32 to vector<16x128xf32>
    %16 = arith.maximumf %14, %15 : vector<16x128xf32>
    %c0_12 = arith.constant 0 : index
    %c0_13 = arith.constant 0 : index
    %17 = vector.load %arg6[%c0_12, %c0_13] : memref<1x128xbf16, #tpu.memory_space<vmem>>, vector<1x128xbf16>
    %18 = arith.extf %17 : vector<1x128xbf16> to vector<1x128xf32>
    %19 = vector.broadcast %18 : vector<1x128xf32> to vector<16x128xf32>
    %20 = arith.mulf %16, %19 : vector<16x128xf32>
    %cst_14 = arith.constant dense<0.000000e+00> : vector<16xf32>
    %21 = vector.multi_reduction <add>, %20, %cst_14 [1] : vector<16x128xf32> to vector<16xf32>
    %22 = vector.shape_cast %21 : vector<16xf32> to vector<16x1xf32>
    %c0_15 = arith.constant 0 : index
    %c0_16 = arith.constant 0 : index
    %23 = memref.load %arg7[%c0_15, %c0_16] : memref<1x1xf32, #tpu.memory_space<smem>>
    %24 = vector.broadcast %23 : f32 to vector<16x1xf32>
    %25 = arith.addf %22, %24 : vector<16x1xf32>
    %c0_17 = arith.constant 0 : index
    %c0_18 = arith.constant 0 : index
    %26 = vector.load %arg8[%c0_17, %c0_18] : memref<16x1xf32, #tpu.memory_space<vmem>>, vector<16x1xf32>
    tpu.vector_store %arg8[%c0_17, %c0_18], %25 {strides = array<i32>} : memref<16x1xf32, #tpu.memory_space<vmem>>, vector<16x1xf32>,
    return
  }
  func.func @transform_0(%arg0: i32) -> (i32, i32) {
    %c0_i32 = arith.constant 0 : i32
    %c0_i32_0 = arith.constant 0 : i32
    return %arg0, %c0_i32 : i32, i32
  }
  func.func @transform_1(%arg0: i32) -> (i32, i32) {
    %c0_i32 = arith.constant 0 : i32
    %c0_i32_0 = arith.constant 0 : i32
    %c0_i32_1 = arith.constant 0 : i32
    return %c0_i32, %c0_i32_0 : i32, i32
  }
  func.func @transform_2(%arg0: i32) -> (i32, i32) {
    %c0_i32 = arith.constant 0 : i32
    %c0_i32_0 = arith.constant 0 : i32
    %c0_i32_1 = arith.constant 0 : i32
    return %c0_i32, %c0_i32_0 : i32, i32
  }
  func.func @transform_3(%arg0: i32) -> (i32, i32) {
    %c0_i32 = arith.constant 0 : i32
    %c0_i32_0 = arith.constant 0 : i32
    %c0_i32_1 = arith.constant 0 : i32
    return %c0_i32, %c0_i32_0 : i32, i32
  }
  func.func @transform_4(%arg0: i32) -> (i32, i32) {
    %c0_i32 = arith.constant 0 : i32
    %c0_i32_0 = arith.constant 0 : i32
    %c0_i32_1 = arith.constant 0 : i32
    return %c0_i32, %c0_i32_0 : i32, i32
  }
  func.func @transform_5(%arg0: i32) -> (i32, i32) {
    %c0_i32 = arith.constant 0 : i32
    %c0_i32_0 = arith.constant 0 : i32
    %c0_i32_1 = arith.constant 0 : i32
    return %c0_i32, %c0_i32_0 : i32, i32
  }
  func.func @transform_6(%arg0: i32) -> (i32, i32) {
    %c0_i32 = arith.constant 0 : i32
    %c0_i32_0 = arith.constant 0 : i32
    %c0_i32_1 = arith.constant 0 : i32
    return %c0_i32, %c0_i32_0 : i32, i32
  }
  func.func @transform_7(%arg0: i32) -> (i32, i32) {
    %c0_i32 = arith.constant 0 : i32
    %c0_i32_0 = arith.constant 0 : i32
    return %arg0, %c0_i32 : i32, i32
  }
}

</mosaic_0001>

<llo_original>
// kernel: tpu_custom_call.1
$region0: #{tpu_custom_call.1}
  #allocation0 [shape = 'u32[]', space=smem, size = 0x4, offset = 0x4, fixed_abs, tag = 'smem constant byte address 0x4 - core index']
  #allocation1 [shape = 'u32[144,128]{1,0:T(1,128)}', space=vmem, size = 0x12000, scoped, tag = 'internal scratch']
  #allocation2 [shape = 'f32[1,1]{1,0:T(1,128)S(6)}', space=smem, size = 0x200, scoped, tag = 'scoped memory for tpu_custom_call.1']
  %s0 = inlined_call_operand.hbm [shape: f32[8,150], index: 0, kind: input, shape index: {}]
  %s1 = inlined_call_operand.hbm [shape: bf16[150,128], index: 1, kind: input, shape index: {}]
  %s2 = inlined_call_operand.vmem [shape: f32[1,128], index: 2, kind: input, shape index: {}]
  %s3 = inlined_call_operand.hbm [shape: bf16[128,128], index: 3, kind: input, shape index: {}]
  %s4 = inlined_call_operand.vmem [shape: f32[1,128], index: 4, kind: input, shape index: {}]
  %s5 = inlined_call_operand.vmem [shape: bf16[1,128], index: 5, kind: input, shape index: {}]
  %s6 = inlined_call_operand.<no memory space> [shape: f32[1,1], index: 6, kind: input, shape index: {}]
  %s7 = inlined_call_operand.vmem [shape: f32[8,1], index: 7, kind: output, shape index: {}]
  %s8 = sld [smem:[#allocation0]]
  $region84: #{tpu_custom_call.1} parent=0
    _
  %s10 = ssub.s32 1, %s8
  %s11 = scalar_select 0, %s10, %s8
  %12 = sst [smem:[#allocation2]] %s6
  $region1: #{tpu_custom_call.1} parent=0
    #allocation3 [shape = 'u8[16384]{0}', space=vmem, size = 0x4000, scoped, tag = 'input window, operand 0, single buffered']
    #allocation4 [shape = 's32[1]{0}', space=sflag, size = 0x4, scoped, tag = 'scoped memory for tpu_custom_call.1']
    #allocation5 [shape = 'u8[38912]{0}', space=vmem, size = 0x9800, scoped, tag = 'input window, operand 1, single buffered']
    #allocation6 [shape = 's32[1]{0}', space=sflag, size = 0x4, scoped, tag = 'scoped memory for tpu_custom_call.1']
    #allocation7 [shape = 'u8[32768]{0}', space=vmem, size = 0x8000, scoped, tag = 'input window, operand 3, single buffered']
    #allocation8 [shape = 'u8[8192]{0}', space=vmem, size = 0x2000, scoped, tag = 'output window, operand 0, single buffered']
    %13 = vsyncpa [#allocation4], 0
    %14 = vsyncpa [#allocation6], 0
    // Predicated region
    $region2: #{tpu_custom_call.1} parent=1 // pred_check
      _
    $region3: #{tpu_custom_call.1} parent=1 // pred_check_branch
      %16 = sbr.rel (0) target = $region5
    $region4: #{tpu_custom_call.1} parent=1 // pred_region
      %s18 = ssub.s32 512, 256
      %19 = vsyncadd [#allocation4], %s18
      %s20 = sshll.u32 [#allocation3], 4
      %s21 = int_to_ptr.vmem [resolvable:$true] %s20
      %26 = dma.hbm_to_vmem [thread:$0]  %s0, 256, %s21, [#allocation4], 256, 256, 16
    $region5: #{tpu_custom_call.1} parent=1 // pred_fallthru
      _
    // Predicated region
    $region6: #{tpu_custom_call.1} parent=1 // pred_check
      _
    $region7: #{tpu_custom_call.1} parent=1 // pred_check_branch
      %28 = sbr.rel (0) target = $region9
    $region8: #{tpu_custom_call.1} parent=1 // pred_region
      %s30 = ssub.s32 1216, 1216
      %31 = vsyncadd [#allocation6], %s30
      %s32 = sshll.u32 [#allocation5], 4
      %s33 = int_to_ptr.vmem [resolvable:$true] %s32
      %38 = dma.hbm_to_vmem [thread:$0]  %s1, 1216, %s33, [#allocation6], 64, 64, 4
    $region9: #{tpu_custom_call.1} parent=1 // pred_fallthru
      _
    // Predicated region
    $region10: #{tpu_custom_call.1} parent=1 // pred_check
      _
    $region11: #{tpu_custom_call.1} parent=1 // pred_check_branch
      %40 = sbr.rel (0) target = $region13
    $region12: #{tpu_custom_call.1} parent=1 // pred_region
      _
    $region13: #{tpu_custom_call.1} parent=1 // pred_fallthru
      _
    // Predicated region
    $region14: #{tpu_custom_call.1} parent=1 // pred_check
      _
    $region15: #{tpu_custom_call.1} parent=1 // pred_check_branch
      %42 = sbr.rel (0) target = $region17
    $region16: #{tpu_custom_call.1} parent=1 // pred_region
      %s44 = ssub.s32 1024, 1024
      %45 = vsyncadd [#allocation6], %s44
      %s46 = sshll.u32 [#allocation7], 4
      %s47 = int_to_ptr.vmem [resolvable:$true] %s46
      %52 = dma.hbm_to_vmem [thread:$0]  %s3, 1024, %s47, [#allocation6], 64, 64, 4
    $region17: #{tpu_custom_call.1} parent=1 // pred_fallthru
      _
    // Predicated region
    $region18: #{tpu_custom_call.1} parent=1 // pred_check
      _
    $region19: #{tpu_custom_call.1} parent=1 // pred_check_branch
      %54 = sbr.rel (0) target = $region21
    $region20: #{tpu_custom_call.1} parent=1 // pred_region
      _
    $region21: #{tpu_custom_call.1} parent=1 // pred_fallthru
      _
    // Predicated region
    $region22: #{tpu_custom_call.1} parent=1 // pred_check
      _
    $region23: #{tpu_custom_call.1} parent=1 // pred_check_branch
      %56 = sbr.rel (0) target = $region25
    $region24: #{tpu_custom_call.1} parent=1 // pred_region
      _
    $region25: #{tpu_custom_call.1} parent=1 // pred_fallthru
      _
    // Predicated region
    $region26: #{tpu_custom_call.1} parent=1 // pred_check
      _
    $region27: #{tpu_custom_call.1} parent=1 // pred_check_branch
      %58 = sbr.rel (0) target = $region29
    $region28: #{tpu_custom_call.1} parent=1 // pred_region
      _
    $region29: #{tpu_custom_call.1} parent=1 // pred_fallthru
      _
    // Predicated region
    $region30: #{tpu_custom_call.1} parent=1 // pred_check
      _
    $region31: #{tpu_custom_call.1} parent=1 // pred_check_branch
      %60 = sbr.rel (0) target = $region33
    $region32: #{tpu_custom_call.1} parent=1 // pred_region
      %61 = dma.done [#allocation4], 512
    $region33: #{tpu_custom_call.1} parent=1 // pred_fallthru
      _
    // Predicated region
    $region34: #{tpu_custom_call.1} parent=1 // pred_check
      _
    $region35: #{tpu_custom_call.1} parent=1 // pred_check_branch
      %63 = sbr.rel (0) target = $region37
    $region36: #{tpu_custom_call.1} parent=1 // pred_region
      %64 = dma.done [#allocation6], 1216
    $region37: #{tpu_custom_call.1} parent=1 // pred_fallthru
      _
    // Predicated region
    $region38: #{tpu_custom_call.1} parent=1 // pred_check
      _
    $region39: #{tpu_custom_call.1} parent=1 // pred_check_branch
      %66 = sbr.rel (0) target = $region41
    $region40: #{tpu_custom_call.1} parent=1 // pred_region
      %67 = dma.done [#allocation6], 1024
    $region41: #{tpu_custom_call.1} parent=1 // pred_fallthru
      _
    %v69 = vld [vmem:[#allocation3] sm:$0xff]
    %v70 = vld [vmem:[#allocation3 + $0x8] sm:$0xff]
    %v71 = vld [vmem:[#allocation3 + $0x10] sm:$0xff]
    %v72 = vld [vmem:[#allocation3 + $0x18] sm:$0xff]
    %v73 = vpack.c.bf16 %v71, %v69
    %v74 = vpack.c.bf16 %v72, %v70
    %v75 = vld [vmem:[#allocation5] sm:$0xf]
    %v76 = vld [vmem:[#allocation5 + $0x4] sm:$0xf]
    %v77 = vld [vmem:[#allocation5 + $0x8] sm:$0xf]
    %v78 = vld [vmem:[#allocation5 + $0xc] sm:$0xf]
    %v79 = vld [vmem:[#allocation5 + $0x10] sm:$0xf]
    %v80 = vld [vmem:[#allocation5 + $0x14] sm:$0xf]
    %v81 = vld [vmem:[#allocation5 + $0x18] sm:$0xf]
    %v82 = vld [vmem:[#allocation5 + $0x1c] sm:$0xf]
    %v83 = vld [vmem:[#allocation5 + $0x20] sm:$0xf]
    %v84 = vld [vmem:[#allocation5 + $0x24] sm:$0xf]
    %v85 = vld [vmem:[#allocation5 + $0x28] sm:$0xf]
    %v86 = vld [vmem:[#allocation5 + $0x2c] sm:$0xf]
    %v87 = vld [vmem:[#allocation5 + $0x30] sm:$0xf]
    %v88 = vld [vmem:[#allocation5 + $0x34] sm:$0xf]
    %v89 = vld [vmem:[#allocation5 + $0x38] sm:$0xf]
    %v90 = vld [vmem:[#allocation5 + $0x3c] sm:$0xf]
    %v91 = vld [vmem:[#allocation5 + $0x40] sm:$0xf]
    %v92 = vld [vmem:[#allocation5 + $0x44] sm:$0xf]
    %v93 = vld [vmem:[#allocation5 + $0x48] sm:$0x7]
    %v94 = vld [vmem:[%s2] sm:$0x1]
    %v96 = vlaneseq
    %v97 = vshrl.u32 %v96, 7
    %v98 = vsub.s32 0, %v97
    %v99 = vrot.slane %v94, %v98
    %v120 = vunpack.c.l.b16 %v75
    %v121 = vunpack.c.l.b16 %v76
    %v122 = vunpack.c.l.b16 %v77
    %v123 = vunpack.c.l.b16 %v78
    %v124 = vunpack.c.l.b16 %v79
    %v125 = vunpack.c.l.b16 %v80
    %v126 = vunpack.c.l.b16 %v81
    %v127 = vunpack.c.l.b16 %v82
    %v128 = vunpack.c.l.b16 %v83
    %v129 = vunpack.c.l.b16 %v84
    %v130 = vunpack.c.l.b16 %v85
    %v131 = vunpack.c.l.b16 %v86
    %v132 = vunpack.c.l.b16 %v87
    %v133 = vunpack.c.l.b16 %v88
    %v134 = vunpack.c.l.b16 %v89
    %v135 = vunpack.c.l.b16 %v90
    %v136 = vunpack.c.l.b16 %v91
    %v137 = vunpack.c.l.b16 %v92
    %v138 = vunpack.c.l.b16 %v93
    %v139 = vpack.c.b16 %v121, %v120
    %v140 = vpack.c.b16 %v123, %v122
    %v141 = vpack.c.b16 %v125, %v124
    %v142 = vpack.c.b16 %v127, %v126
    %v143 = vpack.c.b16 %v129, %v128
    %v144 = vpack.c.b16 %v131, %v130
    %v145 = vpack.c.b16 %v133, %v132
    %v146 = vpack.c.b16 %v135, %v134
    %v147 = vpack.c.b16 %v137, %v136
    %v148 = vpack.c.b16 %v138, %v138
    %vm158 = vcmask 179200
    %v160 = vsel %vm158, %v74, 0
    %vm162 = vcmask 1042432
    %v164 = vsel %vm162, %v148, 0
    %166 = vmatprep.subr.bf16.mxu0 0
    %167 = vmatpush1.bf16.msra.mxu0 %v146
    %168 = vmatprep.subr.bf16.mxu0 0
    %169 = vmatpush1.bf16.msra.mxu0 %v145
    %170 = vmatprep.subr.bf16.mxu0 0
    %171 = vmatpush1.bf16.msra.mxu0 %v144
    %172 = vmatprep.subr.bf16.mxu0 0
    %173 = vmatpush1.bf16.msra.mxu0 %v143
    %174 = vmatprep.subr.bf16.mxu0 0
    %175 = vmatpush1.bf16.msra.mxu0 %v142
    %176 = vmatprep.subr.bf16.mxu0 0
    %177 = vmatpush1.bf16.msra.mxu0 %v141
    %178 = vmatprep.subr.bf16.mxu0 0
    %179 = vmatpush1.bf16.msra.mxu0 %v140
    %180 = vmatprep.subr.bf16.mxu0 0
    %181 = vmatpush1.bf16.msra.mxu0 %v139
    %182 = vmatprep.subr.bf16.mxu0 0
    %183 = vmatpush2.bf16.msra.mxu0 0
    %184 = vmatprep.subr.bf16.mxu0 0
    %185 = vmatpush2.bf16.msra.mxu0 0
    %186 = vmatprep.subr.bf16.mxu0 0
    %187 = vmatpush2.bf16.msra.mxu0 0
    %188 = vmatprep.subr.bf16.mxu0 0
    %189 = vmatpush2.bf16.msra.mxu0 0
    %190 = vmatprep.subr.bf16.mxu0 0
    %191 = vmatpush2.bf16.msra.mxu0 0
    %192 = vmatprep.subr.bf16.mxu0 0
    %193 = vmatpush2.bf16.msra.mxu0 0
    %194 = vmatprep.subr.bf16.mxu0 0
    %195 = vmatpush2.bf16.msra.mxu0 %v164
    %196 = vmatprep.subr.bf16.mxu0 0
    %197 = vmatpush2.bf16.msra.mxu0 %v147
    %198 = vmatprep.mubr.bf16.mxu0 %v160
    %199 = vmatmul.mubr.bf16.gmra.mxu0 %v73
    %v200 = vpop.f32.mrf.mxu0
    %v201 = vadd.f32 %v99, %v200
    %v202 = vpop.f32.mrf.mxu0
    %v203 = vpop.f32.mrf.mxu0
    %v204 = vadd.f32 %v99, %v203
    %v205 = vpop.f32.mrf.mxu0
    %206 = vdwg.mxu0
    %v207 = vmax.f32 %v201, 0.0
    %v208 = vmax.f32 %v204, 0.0
    %v209 = vpack.c.bf16 %v208, %v207
    %v210 = vld [vmem:[#allocation7] sm:$0xf]
    %v211 = vld [vmem:[#allocation7 + $0x4] sm:$0xf]
    %v212 = vld [vmem:[#allocation7 + $0x8] sm:$0xf]
    %v213 = vld [vmem:[#allocation7 + $0xc] sm:$0xf]
    %v214 = vld [vmem:[#allocation7 + $0x10] sm:$0xf]
    %v215 = vld [vmem:[#allocation7 + $0x14] sm:$0xf]
    %v216 = vld [vmem:[#allocation7 + $0x18] sm:$0xf]
    %v217 = vld [vmem:[#allocation7 + $0x1c] sm:$0xf]
    %v218 = vld [vmem:[#allocation7 + $0x20] sm:$0xf]
    %v219 = vld [vmem:[#allocation7 + $0x24] sm:$0xf]
    %v220 = vld [vmem:[#allocation7 + $0x28] sm:$0xf]
    %v221 = vld [vmem:[#allocation7 + $0x2c] sm:$0xf]
    %v222 = vld [vmem:[#allocation7 + $0x30] sm:$0xf]
    %v223 = vld [vmem:[#allocation7 + $0x34] sm:$0xf]
    %v224 = vld [vmem:[#allocation7 + $0x38] sm:$0xf]
    %v225 = vld [vmem:[#allocation7 + $0x3c] sm:$0xf]
    %v226 = vld [vmem:[%s4] sm:$0x1]
    %v228 = vlaneseq
    %v229 = vshrl.u32 %v228, 7
    %v230 = vsub.s32 0, %v229
    %v231 = vrot.slane %v226, %v230
    %v249 = vunpack.c.l.b16 %v210
    %v250 = vunpack.c.l.b16 %v211
    %v251 = vunpack.c.l.b16 %v212
    %v252 = vunpack.c.l.b16 %v213
    %v253 = vunpack.c.l.b16 %v214
    %v254 = vunpack.c.l.b16 %v215
    %v255 = vunpack.c.l.b16 %v216
    %v256 = vunpack.c.l.b16 %v217
    %v257 = vunpack.c.l.b16 %v218
    %v258 = vunpack.c.l.b16 %v219
    %v259 = vunpack.c.l.b16 %v220
    %v260 = vunpack.c.l.b16 %v221
    %v261 = vunpack.c.l.b16 %v222
    %v262 = vunpack.c.l.b16 %v223
    %v263 = vunpack.c.l.b16 %v224
    %v264 = vunpack.c.l.b16 %v225
    %v265 = vpack.c.b16 %v250, %v249
    %v266 = vpack.c.b16 %v252, %v251
    %v267 = vpack.c.b16 %v254, %v253
    %v268 = vpack.c.b16 %v256, %v255
    %v269 = vpack.c.b16 %v258, %v257
    %v270 = vpack.c.b16 %v260, %v259
    %v271 = vpack.c.b16 %v262, %v261
    %v272 = vpack.c.b16 %v264, %v263
    %281 = vmatprep.subr.bf16.mxu0 0
    %282 = vmatpush1.bf16.msra.mxu0 %v272
    %283 = vmatprep.subr.bf16.mxu0 0
    %284 = vmatpush1.bf16.msra.mxu0 %v271
    %285 = vmatprep.subr.bf16.mxu0 0
    %286 = vmatpush1.bf16.msra.mxu0 %v270
    %287 = vmatprep.subr.bf16.mxu0 0
    %288 = vmatpush1.bf16.msra.mxu0 %v269
    %289 = vmatprep.subr.bf16.mxu0 0
    %290 = vmatpush1.bf16.msra.mxu0 %v268
    %291 = vmatprep.subr.bf16.mxu0 0
    %292 = vmatpush1.bf16.msra.mxu0 %v267
    %293 = vmatprep.subr.bf16.mxu0 0
    %294 = vmatpush1.bf16.msra.mxu0 %v266
    %295 = vmatprep.subr.bf16.mxu0 0
    %296 = vmatpush1.bf16.msra.mxu0 %v265
    %297 = vmatprep.subr.bf16.mxu0 0
    %298 = vmatpush2.bf16.msra.mxu0 0
    %299 = vmatprep.subr.bf16.mxu0 0
    %300 = vmatpush2.bf16.msra.mxu0 0
    %301 = vmatprep.subr.bf16.mxu0 0
    %302 = vmatpush2.bf16.msra.mxu0 0
    %303 = vmatprep.subr.bf16.mxu0 0
    %304 = vmatpush2.bf16.msra.mxu0 0
    %305 = vmatprep.subr.bf16.mxu0 0
    %306 = vmatpush2.bf16.msra.mxu0 0
    %307 = vmatprep.subr.bf16.mxu0 0
    %308 = vmatpush2.bf16.msra.mxu0 0
    %309 = vmatprep.subr.bf16.mxu0 0
    %310 = vmatpush2.bf16.msra.mxu0 0
    %311 = vmatprep.subr.bf16.mxu0 0
    %312 = vmatpush2.bf16.msra.mxu0 0
    %313 = vmatprep.mubr.bf16.mxu0 0
    %314 = vmatmul.mubr.bf16.gmra.mxu0 %v209
    %v315 = vpop.f32.mrf.mxu0
    %v316 = vadd.f32 %v231, %v315
    %v317 = vpop.f32.mrf.mxu0
    %v318 = vpop.f32.mrf.mxu0
    %v319 = vadd.f32 %v231, %v318
    %v320 = vpop.f32.mrf.mxu0
    %321 = vdwg.mxu0
    %v322 = vmax.f32 %v316, 0.0
    %v323 = vmax.f32 %v319, 0.0
    %v324 = vld [vmem:[%s5] sm:$0x1]
    %v325 = vunpack.c.l.bf16 %v324
    %v326 = vlaneseq
    %v327 = vshrl.u32 %v326, 7
    %v328 = vsub.s32 0, %v327
    %v329 = vrot.slane %v325, %v328
    %v330 = vmul.f32 %v322, %v329
    %v331 = vmul.f32 %v323, %v329
    %332 = vadd.xlane.f32.xlu0 %v330
    %v333 = vpop.xlane.xlu0 %332
    %334 = vadd.xlane.f32.xlu0 %v331
    %v335 = vpop.xlane.xlu0 %334
    %s336 = sld [smem:[#allocation2]]
    %v337 = vstv %s336
    %v338 = vadd.f32 %v333, %v337
    %v339 = vadd.f32 %v335, %v337
    %vm340 = vcmask 7168
    %341 = vst.msk [vmem:[#allocation8] sm:$0xff] %vm340, %v338
    %342 = vst.msk [vmem:[#allocation8 + $0x8] sm:$0xff] %vm340, %v339
    // Predicated region
    $region42: #{tpu_custom_call.1} parent=1 // pred_check
      _
    $region43: #{tpu_custom_call.1} parent=1 // pred_check_branch
      %344 = sbr.rel (0) target = $region45
    $region44: #{tpu_custom_call.1} parent=1 // pred_region
      // Predicated region
      $region46: #{tpu_custom_call.1} parent=44 // pred_check
        _
      $region47: #{tpu_custom_call.1} parent=44 // pred_check_branch
        %346 = sbr.rel (0) target = $region49
      $region48: #{tpu_custom_call.1} parent=44 // pred_region
        // Predicated region
        $region50: #{tpu_custom_call.1} parent=48 // pred_check
          _
        $region51: #{tpu_custom_call.1} parent=48 // pred_check_branch
          %348 = sbr.rel (0) target = $region53
        $region52: #{tpu_custom_call.1} parent=48 // pred_region
          // Predicated region
          $region65: #{tpu_custom_call.1} parent=52 // pred_check
            _
          $region66: #{tpu_custom_call.1} parent=52 // pred_check_branch
            %364 = sbr.rel (0) target = $region68
          $region67: #{tpu_custom_call.1} parent=52 // pred_region
            loop: start=0, step=1, limit=1
            $region69: #{tpu_custom_call.1} parent=67 // loop_pre_header
              _
            $region70: #{tpu_custom_call.1} parent=67 // loop_header
              %s366 = sphi 0, %s370
              %p367 = scmp.ge.s32.totalorder %s366, 1
              %s371 = sphi [#allocation8], [#allocation8]
              %s372 = sphi %s7, %s7
            $region71: #{tpu_custom_call.1} parent=67 // loop_header_branch
              %369 = sbr.rel (%p367) target = $region75
            $region72: #{tpu_custom_call.1} parent=67 // loop_body
              %v373 = vld [vmem:[%s371] sm:$0xff]
              %374 = vst [vmem:[%s372] sm:$0xff] %v373
            $region73: #{tpu_custom_call.1} parent=67 // loop_footer
              %s370 = sadd.s32 1, %s366
            $region74: #{tpu_custom_call.1} parent=67 // loop_footer_branch
              %365 = sbr.rel target = $region70
            $region75: #{tpu_custom_call.1} parent=67 // loop_exit
              _
          $region68: #{tpu_custom_call.1} parent=52 // pred_fallthru
            _
          // Predicated region
          $region76: #{tpu_custom_call.1} parent=52 // pred_check
            _
          $region77: #{tpu_custom_call.1} parent=52 // pred_check_branch
            %376 = sbr.rel target = $region79
          $region78: #{tpu_custom_call.1} parent=52 // pred_region
            _
          $region79: #{tpu_custom_call.1} parent=52 // pred_fallthru
            _
        $region53: #{tpu_custom_call.1} parent=48 // pred_fallthru
          _
        // Predicated region
        $region54: #{tpu_custom_call.1} parent=48 // pred_check
          _
        $region55: #{tpu_custom_call.1} parent=48 // pred_check_branch
          %350 = sbr.rel target = $region57
        $region56: #{tpu_custom_call.1} parent=48 // pred_region
          %s352 = ssub.s32 256, 1
          loop: start=0, step=1, limit=1
          $region58: #{tpu_custom_call.1} parent=56 // loop_pre_header
            _
          $region59: #{tpu_custom_call.1} parent=56 // loop_header
            %s354 = sphi 0, %s358
            %p355 = scmp.ge.s32.totalorder %s354, 1
            %s359 = sphi [#allocation8], [#allocation8]
            %s360 = sphi %s7, %s7
          $region60: #{tpu_custom_call.1} parent=56 // loop_header_branch
            %357 = sbr.rel (%p355) target = $region64
          $region61: #{tpu_custom_call.1} parent=56 // loop_body
            %v361 = vld [vmem:[%s359] sm:%s352]
            %362 = vst [vmem:[%s360] sm:%s352] %v361
          $region62: #{tpu_custom_call.1} parent=56 // loop_footer
            %s358 = sadd.s32 1, %s354
          $region63: #{tpu_custom_call.1} parent=56 // loop_footer_branch
            %353 = sbr.rel target = $region59
          $region64: #{tpu_custom_call.1} parent=56 // loop_exit
            _
        $region57: #{tpu_custom_call.1} parent=48 // pred_fallthru
          _
      $region49: #{tpu_custom_call.1} parent=44 // pred_fallthru
        _
      %377 = vnop
    $region45: #{tpu_custom_call.1} parent=1 // pred_fallthru
      _
    // Predicated region
    $region80: #{tpu_custom_call.1} parent=1 // pred_check
      _
    $region81: #{tpu_custom_call.1} parent=1 // pred_check_branch
      %379 = sbr.rel (0) target = $region83
    $region82: #{tpu_custom_call.1} parent=1 // pred_region
      _
    $region83: #{tpu_custom_call.1} parent=1 // pred_fallthru
      _
    %380 = vsyncpa [#allocation4], 1
    %381 = vsyncpa [#allocation6], 1

</llo_original>
